<compile_context>
chip_gen: v6e
topology: v6e:2x2x1
jax: 0.10.0
libtpu: 0.0.40
codegen_flags: <defaults>
</compile_context>

<pallas_src>
import functools

import jax
import jax.numpy as jnp
from jax import lax
from jax.experimental import pallas as pl
from jax.experimental.pallas import tpu as pltpu

LANES = 128
SUBLANES = 8
CHUNK_ROWS = 1024            # in-kernel sub-chunk: 1024*128*4B = 512 KiB f32
SMALL_N = 1 << 18            # below this, plain jnp (launch cost dominates)


def _chip_config():
    """Generation-dependent tiling / core-sharding choices."""
    try:
        kind = jax.devices()[0].device_kind.lower()
    except Exception:  # defensive default
        kind = ""
    if "v7" in kind or "tpu7" in kind:
        # v7x: 2 TensorCores/chip but only 64 MiB VMEM -> 2 MiB blocks,
        # 32 MiB scoped limit, real cross-core sharding.
        return dict(ncores=2, max_tile_rows=4096,
                    vmem_limit=32 * 1024 * 1024,
                    core_sem=pltpu.CORE_PARALLEL)
    big_vmem = ("v5" in kind) or ("v6" in kind)   # 128 MiB physical VMEM
    return dict(ncores=1,
                max_tile_rows=8192 if big_vmem else 4096,
                vmem_limit=(64 if big_vmem else 32) * 1024 * 1024,
                core_sem=pltpu.ARBITRARY)


def _wse_kernel(x_ref, t_ref, w_ref, o_ref, *, tile_rows, chunk_rows,
                valid_rows, blocks_per_core, edge_block, needs_mask):
    c = pl.program_id(0)
    i = pl.program_id(1)

    @pl.when(i == 0)
    def _init():
        o_ref[...] = jnp.zeros_like(o_ref)

    logical_block = c * blocks_per_core + i
    base_row = logical_block * tile_rows

    def accumulate(masked):
        n_full = tile_rows // chunk_rows
        rem = tile_rows % chunk_rows

        def do_chunk(r0, nrows):
            x = x_ref[pl.ds(r0, nrows), :].astype(jnp.float32)
            t = t_ref[pl.ds(r0, nrows), :].astype(jnp.float32)
            w = w_ref[pl.ds(r0, nrows), :].astype(jnp.float32)
            d = x - t
            p = w * d * d
            if masked:
                # Only edge blocks (ragged last block / duplicated clamped
                # blocks) pay this: zero rows past the real array extent
                # (OOB rows of the clipped DMA may contain garbage/NaN).
                row_ids = base_row + r0 + lax.broadcasted_iota(
                    jnp.int32, (nrows, LANES), 0)
                p = jnp.where(row_ids < valid_rows, p, 0.0)
            # (nrows, 128) -> (8, 128): leading-axis reduction lowers to plain
            # VPU vreg adds into the resident output block (no XLU per step).
            o_ref[...] += p.reshape(nrows // SUBLANES, SUBLANES, LANES).sum(axis=0)

        if n_full > 1:
            def body(ci, carry):
                do_chunk(pl.multiple_of(ci * chunk_rows, chunk_rows), chunk_rows)
                return carry
            lax.fori_loop(0, n_full, body, 0)
        elif n_full == 1:
            do_chunk(0, chunk_rows)
        if rem:
            do_chunk(n_full * chunk_rows, rem)

    if needs_mask:
        is_edge = logical_block >= edge_block
        @pl.when(jnp.logical_not(is_edge))
        def _clean():
            accumulate(False)
        @pl.when(is_edge)
        def _edge():
            accumulate(True)
    else:
        accumulate(False)


def weighted_se_loss(inp, target, weight, *, force_pallas=False):
    """sum(weight * (inp - target) ** 2), fully reduced to an f32 scalar."""
    assert inp.shape == target.shape == weight.shape
    n = int(inp.size)
    if n == 0:
        return jnp.float32(0.0)

    def jnp_ref(x, t, w):
        x = x.astype(jnp.float32)
        t = t.astype(jnp.float32)
        w = w.astype(jnp.float32)
        return jnp.sum(w * jnp.square(x - t))

    if (not force_pallas) and n < SMALL_N:
        # Launch + pipeline warm-up would dominate; XLA's fused reduce is fine.
        return jnp_ref(inp, target, weight)

    # TODO(synk): bf16/int8 inputs are cast to f32 here instead of handling the
    # packed (16/32, 128) sublane tiling inside the kernel.
    def flat32(a):
        return a.reshape(-1).astype(jnp.float32)

    x_flat, t_flat, w_flat = flat32(inp), flat32(target), flat32(weight)

    tile_elems = SUBLANES * LANES              # 1024
    tail = n % tile_elems
    main = n - tail

    tail_sum = jnp.float32(0.0)
    if tail:
        # Small unaligned tail (< 1024 elems) computed directly in the wrapper;
        # the aligned prefix keeps a lane-dense (rows, 128) view.
        tail_sum = jnp_ref(lax.slice(x_flat, (main,), (n,)),
                           lax.slice(t_flat, (main,), (n,)),
                           lax.slice(w_flat, (main,), (n,)))
        if main == 0:
            return tail_sum
        x_flat = lax.slice(x_flat, (0,), (main,))
        t_flat = lax.slice(t_flat, (0,), (main,))
        w_flat = lax.slice(w_flat, (0,), (main,))

    x2 = x_flat.reshape(-1, LANES)
    t2 = t_flat.reshape(-1, LANES)
    w2 = w_flat.reshape(-1, LANES)
    rows = x2.shape[0]                         # multiple of 8

    cfg = _chip_config()
    tile_rows = min(cfg["max_tile_rows"], rows)        # multiple of 8
    total_blocks = -(-rows // tile_rows)
    ncores = min(cfg["ncores"], total_blocks)
    bpc = -(-total_blocks // ncores)                   # blocks per core
    ragged = (rows % tile_rows) != 0
    duplicates = (ncores * bpc) != total_blocks
    needs_mask = ragged or duplicates
    edge_block = (total_blocks - 1) if ragged else total_blocks
    chunk_rows = min(CHUNK_ROWS, tile_rows)

    if ncores == 1:
        def in_map(c, i):
            return (i, 0)
    else:
        def in_map(c, i):
            # Clamp so the padded per-core range never issues an OOB block DMA;
            # the in-kernel mask zeroes duplicated / ragged rows.
            return (jnp.minimum(c * bpc + i, total_blocks - 1), 0)

    kernel = functools.partial(
        _wse_kernel,
        tile_rows=tile_rows, chunk_rows=chunk_rows,
        valid_rows=rows, blocks_per_core=bpc,
        edge_block=edge_block, needs_mask=needs_mask)

    core_sem = cfg["core_sem"] if ncores > 1 else pltpu.ARBITRARY

    out = pl.pallas_call(
        kernel,
        out_shape=jax.ShapeDtypeStruct((ncores, SUBLANES, LANES), jnp.float32),
        grid_spec=pltpu.PrefetchScalarGridSpec(
            num_scalar_prefetch=0,
            grid=(ncores, bpc),
            in_specs=[
                pl.BlockSpec((tile_rows, LANES), in_map),
                pl.BlockSpec((tile_rows, LANES), in_map),
                pl.BlockSpec((tile_rows, LANES), in_map),
            ],
            out_specs=pl.BlockSpec((None, SUBLANES, LANES),
                                   lambda c, i: (c, 0, 0)),
        ),
        compiler_params=pltpu.CompilerParams(
            dimension_semantics=(core_sem, pltpu.ARBITRARY),
            vmem_limit_bytes=cfg["vmem_limit"],
        ),
        cost_estimate=pl.CostEstimate(
            flops=4 * main,
            transcendentals=0,
            bytes_accessed=3 * main * 4 + ncores * SUBLANES * LANES * 4,
        ),
    )(x2, t2, w2)

    # Single final cross-lane reduction of the ncores*8*128 partial sums.
    return jnp.sum(out) + tail_sum


def _check(shape, key, force_pallas=False):
    k1, k2, k3 = jax.random.split(key, 3)
    inp = jax.random.normal(k1, shape, dtype=jnp.float32)
    target = jax.random.normal(k2, shape, dtype=jnp.float32)
    weight = jax.random.uniform(k3, shape, dtype=jnp.float32)
    loss = weighted_se_loss(inp, target, weight, force_pallas=force_pallas)
    jax.block_until_ready(loss)
    ref = jnp.sum(weight * (inp - target) ** 2)
    assert jnp.allclose(loss, ref, rtol=1e-4, atol=1e-2), (shape, loss, ref)
    return loss


if __name__ == "__main__":
    key = jax.random.PRNGKey(0)
    k0, k1, k2, k3 = jax.random.split(key, 4)

    # Primary small NCHW-like case (n = 2048): small-n jnp fallback path.
    _check((2, 4, 16, 16), k0)
    # Same small case forced through the Pallas kernel (aligned, single block).
    _check((2, 4, 16, 16), k1, force_pallas=True)
    # Misaligned size (n = 1155): aligned prefix via the kernel + jnp tail.
    _check((3, 5, 7, 11), k2, force_pallas=True)
    # Automatic Pallas path; exercises the in-kernel sub-chunk loop
    # (rows = 2304 -> 2 full 1024-row chunks + 256-row remainder).
    _check((4, 8, 96, 96), k3)
    # Multi-block + ragged-last-block (and duplicate-block on v7x) path:
    # n = 1,064,960 -> rows = 8320 (> one tile on every generation).
    _check((8, 8, 128, 130), jax.random.PRNGKey(1))

    print("KERNEL_OK")
</pallas_src>

<mosaic_0001>
module attributes {stable_mosaic.version = 11 : i64} {
  func.func @_wse_kernel(%arg0: i32, %arg1: i32, %arg2: memref<16x128xf32, #tpu.memory_space<vmem>>, %arg3: memref<16x128xf32, #tpu.memory_space<vmem>>, %arg4: memref<16x128xf32, #tpu.memory_space<vmem>>, %arg5: memref<1x8x128xf32, #tpu.memory_space<vmem>>) attributes {dimension_semantics = [#tpu.dimension_semantics<arbitrary>, #tpu.dimension_semantics<arbitrary>], iteration_bounds = array<i64: 1, 1>, scalar_prefetch = 0 : i64, scratch_operands = 0 : i64, tpu.core_type = #tpu.core_type<tc>, window_params = [{transform_indices = @transform_0, window_bounds = array<i64: 16, 128>}, {transform_indices = @transform_1, window_bounds = array<i64: 16, 128>}, {transform_indices = @transform_2, window_bounds = array<i64: 16, 128>}, {transform_indices = @transform_3, window_bounds = array<i64: 1, 8, 128>}]} {
    %c0_i32 = arith.constant 0 : i32
    %0 = arith.cmpi eq, %arg1, %c0_i32 : i32
    %1 = arith.extui %0 : i1 to i32
    %c0_i32_0 = arith.constant 0 : i32
    %2 = arith.cmpi ne, %1, %c0_i32_0 : i32
    scf.if %2 {
      %cst_12 = arith.constant 0.000000e+00 : f32
      %17 = vector.broadcast %cst_12 : f32 to vector<8x128xf32>
      %c0_13 = arith.constant 0 : index
      %c0_14 = arith.constant 0 : index
      %c0_15 = arith.constant 0 : index
      %18 = vector.load %arg5[%c0_13, %c0_14, %c0_15] : memref<1x8x128xf32, #tpu.memory_space<vmem>>, vector<1x8x128xf32>
      %19 = vector.shape_cast %18 : vector<1x8x128xf32> to vector<8x128xf32>
      %20 = vector.shape_cast %17 : vector<8x128xf32> to vector<1x8x128xf32>
      tpu.vector_store %arg5[%c0_13, %c0_14, %c0_15], %20 {strides = array<i32>} : memref<1x8x128xf32, #tpu.memory_space<vmem>>, vector<1x8x128xf32>,
    } else {
    }
    %c0 = arith.constant 0 : index
    %c0_1 = arith.constant 0 : index
    %3 = vector.load %arg2[%c0, %c0_1] : memref<16x128xf32, #tpu.memory_space<vmem>>, vector<16x128xf32>
    %c0_2 = arith.constant 0 : index
    %c0_3 = arith.constant 0 : index
    %4 = vector.load %arg3[%c0_2, %c0_3] : memref<16x128xf32, #tpu.memory_space<vmem>>, vector<16x128xf32>
    %c0_4 = arith.constant 0 : index
    %c0_5 = arith.constant 0 : index
    %5 = vector.load %arg4[%c0_4, %c0_5] : memref<16x128xf32, #tpu.memory_space<vmem>>, vector<16x128xf32>
    %6 = arith.subf %3, %4 : vector<16x128xf32>
    %7 = arith.mulf %5, %6 : vector<16x128xf32>
    %8 = arith.mulf %7, %6 : vector<16x128xf32>
    %c0_6 = arith.constant 0 : index
    %c0_7 = arith.constant 0 : index
    %c0_8 = arith.constant 0 : index
    %9 = vector.load %arg5[%c0_6, %c0_7, %c0_8] : memref<1x8x128xf32, #tpu.memory_space<vmem>>, vector<1x8x128xf32>
    %10 = vector.shape_cast %9 : vector<1x8x128xf32> to vector<8x128xf32>
    %11 = vector.shape_cast %8 : vector<16x128xf32> to vector<2x8x128xf32>
    %cst = arith.constant dense<0.000000e+00> : vector<8x128xf32>
    %12 = vector.multi_reduction <add>, %11, %cst [0] : vector<2x8x128xf32> to vector<8x128xf32>
    %13 = arith.addf %10, %12 : vector<8x128xf32>
    %c0_9 = arith.constant 0 : index
    %c0_10 = arith.constant 0 : index
    %c0_11 = arith.constant 0 : index
    %14 = vector.load %arg5[%c0_9, %c0_10, %c0_11] : memref<1x8x128xf32, #tpu.memory_space<vmem>>, vector<1x8x128xf32>
    %15 = vector.shape_cast %14 : vector<1x8x128xf32> to vector<8x128xf32>
    %16 = vector.shape_cast %13 : vector<8x128xf32> to vector<1x8x128xf32>
    tpu.vector_store %arg5[%c0_9, %c0_10, %c0_11], %16 {strides = array<i32>} : memref<1x8x128xf32, #tpu.memory_space<vmem>>, vector<1x8x128xf32>,
    return
  }
  func.func @transform_0(%arg0: i32, %arg1: i32) -> (i32, i32) {
    %c0_i32 = arith.constant 0 : i32
    %c0_i32_0 = arith.constant 0 : i32
    return %arg1, %c0_i32 : i32, i32
  }
  func.func @transform_1(%arg0: i32, %arg1: i32) -> (i32, i32) {
    %c0_i32 = arith.constant 0 : i32
    %c0_i32_0 = arith.constant 0 : i32
    return %arg1, %c0_i32 : i32, i32
  }
  func.func @transform_2(%arg0: i32, %arg1: i32) -> (i32, i32) {
    %c0_i32 = arith.constant 0 : i32
    %c0_i32_0 = arith.constant 0 : i32
    return %arg1, %c0_i32 : i32, i32
  }
  func.func @transform_3(%arg0: i32, %arg1: i32) -> (i32, i32, i32) {
    %c0_i32 = arith.constant 0 : i32
    %c0_i32_0 = arith.constant 0 : i32
    %c0_i32_1 = arith.constant 0 : i32
    return %arg0, %c0_i32, %c0_i32_0 : i32, i32, i32
  }
}

</mosaic_0001>

<llo_original>
// kernel: tpu_custom_call.1
$region0: #{tpu_custom_call.1}
  #allocation0 [shape = 'u32[]', space=smem, size = 0x4, offset = 0x4, fixed_abs, tag = 'smem constant byte address 0x4 - core index']
  #allocation1 [shape = 'u32[144,128]{1,0:T(1,128)}', space=vmem, size = 0x12000, scoped, tag = 'internal scratch']
  %s0 = inlined_call_operand.hbm [shape: f32[16,128], index: 0, kind: input, shape index: {}]
  %s1 = inlined_call_operand.hbm [shape: f32[16,128], index: 1, kind: input, shape index: {}]
  %s2 = inlined_call_operand.hbm [shape: f32[16,128], index: 2, kind: input, shape index: {}]
  %s3 = inlined_call_operand.hbm [shape: f32[1,8,128], index: 3, kind: output, shape index: {}]
  %s4 = sld [smem:[#allocation0]]
  $region38: #{tpu_custom_call.1} parent=0
    _
  %s6 = ssub.s32 1, %s4
  %s7 = scalar_select 0, %s6, %s4
  $region1: #{tpu_custom_call.1} parent=0
    #allocation2 [shape = 'u8[8192]{0}', space=vmem, size = 0x2000, scoped, tag = 'input window, operand 0, single buffered']
    #allocation3 [shape = 's32[1]{0}', space=sflag, size = 0x4, scoped, tag = 'scoped memory for tpu_custom_call.1']
    #allocation4 [shape = 's32[1]{0}', space=sflag, size = 0x4, scoped, tag = 'scoped memory for tpu_custom_call.1']
    #allocation5 [shape = 'u8[8192]{0}', space=vmem, size = 0x2000, scoped, tag = 'input window, operand 1, single buffered']
    #allocation6 [shape = 's32[1]{0}', space=sflag, size = 0x4, scoped, tag = 'scoped memory for tpu_custom_call.1']
    #allocation7 [shape = 'u8[8192]{0}', space=vmem, size = 0x2000, scoped, tag = 'input window, operand 2, single buffered']
    #allocation8 [shape = 'u8[4096]{0}', space=vmem, size = 0x1000, scoped, tag = 'output window, operand 0, single buffered']
    %8 = vsyncpa [#allocation3], 0
    %9 = vsyncpa [#allocation6], 0
    %10 = vsyncpa [#allocation4], 0
    // Predicated region
    $region2: #{tpu_custom_call.1} parent=1 // pred_check
      _
    $region3: #{tpu_custom_call.1} parent=1 // pred_check_branch
      %12 = sbr.rel (0) target = $region5
    $region4: #{tpu_custom_call.1} parent=1 // pred_region
      %s14 = ssub.s32 256, 256
      %15 = vsyncadd [#allocation3], %s14
      %s16 = sshll.u32 [#allocation2], 4
      %s17 = int_to_ptr.vmem [resolvable:$true] %s16
      %22 = dma.hbm_to_vmem [thread:$0]  %s0, 256, %s17, [#allocation3], 128, 128, 8
    $region5: #{tpu_custom_call.1} parent=1 // pred_fallthru
      _
    // Predicated region
    $region6: #{tpu_custom_call.1} parent=1 // pred_check
      _
    $region7: #{tpu_custom_call.1} parent=1 // pred_check_branch
      %24 = sbr.rel (0) target = $region9
    $region8: #{tpu_custom_call.1} parent=1 // pred_region
      %s26 = ssub.s32 256, 256
      %27 = vsyncadd [#allocation6], %s26
      %s28 = sshll.u32 [#allocation5], 4
      %s29 = int_to_ptr.vmem [resolvable:$true] %s28
      %34 = dma.hbm_to_vmem [thread:$0]  %s1, 256, %s29, [#allocation6], 128, 128, 8
    $region9: #{tpu_custom_call.1} parent=1 // pred_fallthru
      _
    // Predicated region
    $region10: #{tpu_custom_call.1} parent=1 // pred_check
      _
    $region11: #{tpu_custom_call.1} parent=1 // pred_check_branch
      %36 = sbr.rel (0) target = $region13
    $region12: #{tpu_custom_call.1} parent=1 // pred_region
      %s38 = ssub.s32 256, 256
      %39 = vsyncadd [#allocation6], %s38
      %s40 = sshll.u32 [#allocation7], 4
      %s41 = int_to_ptr.vmem [resolvable:$true] %s40
      %46 = dma.hbm_to_vmem [thread:$0]  %s2, 256, %s41, [#allocation6], 128, 128, 8
    $region13: #{tpu_custom_call.1} parent=1 // pred_fallthru
      _
    // Predicated region
    $region14: #{tpu_custom_call.1} parent=1 // pred_check
      _
    $region15: #{tpu_custom_call.1} parent=1 // pred_check_branch
      %48 = sbr.rel (0) target = $region17
    $region16: #{tpu_custom_call.1} parent=1 // pred_region
      %49 = dma.done [#allocation3], 256
    $region17: #{tpu_custom_call.1} parent=1 // pred_fallthru
      _
    // Predicated region
    $region18: #{tpu_custom_call.1} parent=1 // pred_check
      _
    $region19: #{tpu_custom_call.1} parent=1 // pred_check_branch
      %51 = sbr.rel (0) target = $region21
    $region20: #{tpu_custom_call.1} parent=1 // pred_region
      %52 = dma.done [#allocation6], 256
    $region21: #{tpu_custom_call.1} parent=1 // pred_fallthru
      _
    // Predicated region
    $region22: #{tpu_custom_call.1} parent=1 // pred_check
      _
    $region23: #{tpu_custom_call.1} parent=1 // pred_check_branch
      %54 = sbr.rel (0) target = $region25
    $region24: #{tpu_custom_call.1} parent=1 // pred_region
      %55 = dma.done [#allocation6], 256
    $region25: #{tpu_custom_call.1} parent=1 // pred_fallthru
      _
    %p56 = scmp.eq.s32.totalorder 0, 0
    // Predicated region
    $region26: #{tpu_custom_call.1} parent=1 // pred_check
      %p57 = pneg %p56
    $region27: #{tpu_custom_call.1} parent=1 // pred_check_branch
      %59 = sbr.rel (%p57) target = $region29
    $region28: #{tpu_custom_call.1} parent=1 // pred_region
      %60 = vst [vmem:[#allocation8] sm:$0xff] 0.0
    $region29: #{tpu_custom_call.1} parent=1 // pred_fallthru
      _
    %v61 = vld [vmem:[#allocation2] sm:$0xff]
    %v62 = vld [vmem:[#allocation2 + $0x8] sm:$0xff]
    %v63 = vld [vmem:[#allocation5] sm:$0xff]
    %v64 = vld [vmem:[#allocation5 + $0x8] sm:$0xff]
    %v65 = vld [vmem:[#allocation7] sm:$0xff]
    %v66 = vld [vmem:[#allocation7 + $0x8] sm:$0xff]
    %v67 = vsub.f32 %v61, %v63
    %v68 = vsub.f32 %v62, %v64
    %v69 = vmul.f32 %v65, %v67
    %v70 = vmul.f32 %v66, %v68
    %v71 = vmul.f32 %v69, %v67
    %v72 = vmul.f32 %v70, %v68
    %v73 = vld [vmem:[#allocation8] sm:$0xff]
    %v74 = vadd.f32 %v71, %v72
    %v75 = vadd.f32 %v73, %v74
    %76 = vst [vmem:[#allocation8] sm:$0xff] %v75
    // Predicated region
    $region30: #{tpu_custom_call.1} parent=1 // pred_check
      _
    $region31: #{tpu_custom_call.1} parent=1 // pred_check_branch
      %78 = sbr.rel (0) target = $region33
    $region32: #{tpu_custom_call.1} parent=1 // pred_region
      %s80 = ssub.s32 128, 128
      %81 = vsyncadd [#allocation4], %s80
      %s83 = sshll.u32 [#allocation8], 4
      %s84 = int_to_ptr.vmem [resolvable:$true] %s83
      %86 = dma.vmem_to_hbm [thread:$0]  %s84, 128, %s3, [#allocation4]
    $region33: #{tpu_custom_call.1} parent=1 // pred_fallthru
      _
    // Predicated region
    $region34: #{tpu_custom_call.1} parent=1 // pred_check
      _
    $region35: #{tpu_custom_call.1} parent=1 // pred_check_branch
      %88 = sbr.rel (0) target = $region37
    $region36: #{tpu_custom_call.1} parent=1 // pred_region
      %89 = dma.done [#allocation4], 128
    $region37: #{tpu_custom_call.1} parent=1 // pred_fallthru
      _
    %90 = vsyncpa [#allocation3], 1
    %91 = vsyncpa [#allocation6], 1
    %92 = vsyncpa [#allocation4], 1

</llo_original>
